<compile_context>
chip_gen: v7x
topology: tpu7x:2x2x1
jax: 0.10.0
libtpu: 0.0.40
codegen_flags: <defaults>
</compile_context>

<pallas_src>
import jax
import jax.numpy as jnp
from jax.experimental import pallas as pl
from jax.experimental.pallas import tpu as pltpu


def _cdiv(a, b):
    return -(-a // b)


def _resblock_kernel(x_ref, m1_ref, b1_ref, m2_ref, b2_ref, mt_ref, mb_ref,
                     out_ref):
    """Fused ResBlock forward for one (R, L) packed block.

    x_ref  : (R, L)     packed activations, R = RP*H rows, L = LP*W*C lanes
    m*_ref : (3, L, L)  block-diagonal banded conv weights, one matrix per kh tap
    b*_ref : (1, L)     per-lane bias (bias tiled across W and the LP images)
    mt_ref : (R, 1)     0.0 on each image's top row, 1.0 elsewhere
    mb_ref : (R, 1)     0.0 on each image's bottom row, 1.0 elsewhere
    out_ref: (R, L)     lane-dense output block (L is a multiple of 128)
    """
    x = x_ref[...]                                   # (R, L)
    R = x.shape[0]
    mt = mt_ref[...]                                 # (R, 1)
    mb = mb_ref[...]                                 # (R, 1)

    def conv3x3(inp_f32, m_ref, b_ref):
        inp = inp_f32.astype(m_ref.dtype)            # MXU operand dtype
        # Vertical taps via XLU rolls along the row axis; the masks zero the
        # wrapped row and every per-image boundary row (per-image SAME pad).
        # shift=R-1 is the non-negative equivalent of shift=-1.
        x_up = pltpu.roll(inp, shift=1, axis=0) * mt       # row h-1
        x_dn = pltpu.roll(inp, shift=R - 1, axis=0) * mb   # row h+1
        # Horizontal taps + horizontal padding + channel mixing live inside the
        # banded block-diagonal matrices.
        acc = jnp.dot(x_up, m_ref[0], preferred_element_type=jnp.float32)
        acc = acc + jnp.dot(inp, m_ref[1], preferred_element_type=jnp.float32)
        acc = acc + jnp.dot(x_dn, m_ref[2], preferred_element_type=jnp.float32)
        return acc + b_ref[...].astype(jnp.float32)  # (1, L) broadcast

    y = jnp.maximum(conv3x3(x, m1_ref, b1_ref), 0.0)            # relu(conv1(x))
    out = conv3x3(y, m2_ref, b2_ref) + x.astype(jnp.float32)    # conv2 + identity
    out_ref[...] = out.astype(out_ref.dtype)


def _band_weights(w_oihw, W):
    """PyTorch OIHW 3x3 conv weight -> 3 banded (W*Cin, W*Cout) matrices (per kh).

    M[kh][wi*Cin + ci, wo*Cout + co] = weight[co, ci, kh, wi - wo + 1]
    for |wi - wo| <= 1 (zero outside the band == horizontal SAME padding).
    """
    Cout, Cin, Kh, Kw = w_oihw.shape
    w_hwio = jnp.transpose(w_oihw, (2, 3, 1, 0)).astype(jnp.float32)  # (Kh,Kw,Cin,Cout)
    wi = jnp.arange(W)[:, None]                  # input column
    wo = jnp.arange(W)[None, :]                  # output column
    kw = wi - wo + (Kw - 1) // 2                 # horizontal tap linking wi -> wo
    valid = (kw >= 0) & (kw < Kw)
    taps = w_hwio[:, jnp.clip(kw, 0, Kw - 1)]                     # (Kh,W,W,Cin,Cout)
    taps = jnp.where(valid[None, :, :, None, None], taps, 0.0)
    return jnp.transpose(taps, (0, 1, 3, 2, 4)).reshape(Kh, W * Cin, W * Cout)


def _block_diag(m, lp):
    """(Kh, a, b) -> (Kh, lp*a, lp*b) block-diagonal (one block per packed image)."""
    if lp == 1:
        return m
    Kh, a, b = m.shape
    eye = jnp.eye(lp, dtype=m.dtype)
    return jnp.einsum("ij,kab->kiajb", eye, m).reshape(Kh, lp * a, lp * b)


def _choose_packing(B, H, WC):
    """Returns (images per lane-group, lane-groups per row-block)."""
    if WC % 128 == 0:
        lp = 1                                # already lane-dense
    elif 128 % WC == 0:
        lp = 128 // WC                        # pack images until lanes hit 128
    else:
        lp = 1                                # TODO(synk): non-divisor W*C keeps masked stores
    n_groups = _cdiv(B, lp)
    rp = max(1, min(max(1, 128 // H), n_groups))   # target ~128 rows per block
    while rp > 1 and _cdiv(n_groups, rp) < 2:      # keep >=2 grid steps (v7x megacore)
        rp = max(1, rp // 2)
    if (rp * H) % 8 != 0:                     # row-block must be 8-aligned unless single-step
        rp = n_groups
    return lp, rp


def resblock_forward(x_nchw, w1, b1, w2, b2, *, compute_dtype=jnp.float32):
    """ResBlock forward. x_nchw: (B, Cin, H, W); weights in PyTorch OIHW layout.

    compute_dtype: MXU operand dtype. float32 -> exact parity with PyTorch;
    bfloat16 -> v6e/v7x fast path (accumulation stays f32, looser parity).
    """
    B, Cin, H, W = x_nchw.shape
    Cout = w1.shape[0]
    assert w1.shape == (Cout, Cin, 3, 3) and w2.shape == (Cout, Cout, 3, 3)
    # This ResBlock config has res_translate=None: identity residual requires it.
    assert Cin == Cout, "identity residual requires inplanes == planes (stride 1)"

    lp, rp = _choose_packing(B, H, W * Cin)
    L = lp * W * Cout                 # lanes per block (Cin == Cout)
    R = rp * H                        # rows per block
    per_step = lp * rp
    G = _cdiv(B, per_step)
    B_pad = G * per_step

    # Pack batch into lanes and rows: image b = (g*rp + r)*lp + l lives at
    # rows [ (g*rp + r)*H , ... ) and lanes [ l*W*C , ... ).
    x_nhwc = jnp.transpose(x_nchw, (0, 2, 3, 1)).astype(compute_dtype)
    if B_pad != B:
        x_nhwc = jnp.pad(x_nhwc, ((0, B_pad - B), (0, 0), (0, 0), (0, 0)))
    x_slab = x_nhwc.reshape(G, rp, lp, H, W * Cin)
    x_slab = jnp.transpose(x_slab, (0, 1, 3, 2, 4)).reshape(G * R, lp * W * Cin)

    # Banded conv weights, block-diagonal over the lane-packed images.
    m1 = _block_diag(_band_weights(w1, W), lp).astype(compute_dtype)   # (3, L, L)
    m2 = _block_diag(_band_weights(w2, W), lp).astype(compute_dtype)
    b1_row = jnp.tile(b1.astype(jnp.float32), lp * W)[None, :]         # (1, L)
    b2_row = jnp.tile(b2.astype(jnp.float32), lp * W)[None, :]

    # Per-image vertical boundary masks (hoisted out of the kernel body).
    rows = jnp.arange(R)
    mask_top = (rows % H != 0).astype(compute_dtype)[:, None]          # (R, 1)
    mask_bot = (rows % H != H - 1).astype(compute_dtype)[:, None]

    out_slab = pl.pallas_call(
        _resblock_kernel,
        out_shape=jax.ShapeDtypeStruct((G * R, L), jnp.float32),
        grid=(G,),
        in_specs=[
            pl.BlockSpec((R, L), lambda g: (g, 0)),         # activation block
            pl.BlockSpec((3, L, L), lambda g: (0, 0, 0)),   # conv1 weights (resident)
            pl.BlockSpec((1, L), lambda g: (0, 0)),
            pl.BlockSpec((3, L, L), lambda g: (0, 0, 0)),   # conv2 weights (resident)
            pl.BlockSpec((1, L), lambda g: (0, 0)),
            pl.BlockSpec((R, 1), lambda g: (0, 0)),         # top-row mask
            pl.BlockSpec((R, 1), lambda g: (0, 0)),         # bottom-row mask
        ],
        out_specs=pl.BlockSpec((R, L), lambda g: (g, 0)),   # lane-dense output
        compiler_params=pltpu.CompilerParams(
            dimension_semantics=("parallel",)),             # megacore over row blocks
    )(x_slab, m1, b1_row, m2, b2_row, mask_top, mask_bot)

    # Unpack back to NCHW for the PyTorch-compatible interface.
    out = out_slab.reshape(G, rp, H, lp, W, Cout)
    out = jnp.transpose(out, (0, 1, 3, 2, 4, 5)).reshape(B_pad, H, W, Cout)[:B]
    return jnp.transpose(out, (0, 3, 1, 2))


def _reference_forward(x_nchw, w1, b1, w2, b2):
    """Pure-JAX reference matching the PyTorch module (for verification)."""
    dn = ("NCHW", "OIHW", "NCHW")
    y = jax.lax.conv_general_dilated(x_nchw, w1, (1, 1), "SAME",
                                     dimension_numbers=dn) + b1[None, :, None, None]
    y = jnp.maximum(y, 0.0)
    y = jax.lax.conv_general_dilated(y, w2, (1, 1), "SAME",
                                     dimension_numbers=dn) + b2[None, :, None, None]
    return y + x_nchw


if __name__ == "__main__":
    # ResBlock(inplanes=4, planes=4, kernel_size=3, stride=1, dilation=1).
    # batch=8 exercises lane packing (2 images -> 128 lanes), row packing
    # (2 lane-groups -> 32-row blocks) and a 2-step parallel grid.
    B, C, H, W = 8, 4, 16, 16
    K = 3

    key = jax.random.PRNGKey(0)
    kx, k1, kb1, k2, kb2 = jax.random.split(key, 5)
    x = jax.random.normal(kx, (B, C, H, W), jnp.float32)
    w1 = 0.1 * jax.random.normal(k1, (C, C, K, K), jnp.float32)   # conv1 weight (OIHW)
    b1 = 0.1 * jax.random.normal(kb1, (C,), jnp.float32)
    w2 = 0.1 * jax.random.normal(k2, (C, C, K, K), jnp.float32)   # conv2 weight (OIHW)
    b2 = 0.1 * jax.random.normal(kb2, (C,), jnp.float32)

    out = jax.block_until_ready(resblock_forward(x, w1, b1, w2, b2))
    ref = jax.block_until_ready(_reference_forward(x, w1, b1, w2, b2))
    assert out.shape == (B, C, H, W)
    assert jnp.allclose(out, ref, rtol=1e-4, atol=1e-4), "mismatch vs reference"

    # TODO(synk): on v6e/v7x, pass compute_dtype=jnp.bfloat16 for ~2x MXU
    # throughput (re-validate with a looser tolerance).

    print("KERNEL_OK")
</pallas_src>

<mosaic_0001>
module attributes {stable_mosaic.version = 11 : i64} {
  func.func @_resblock_kernel(%arg0: i32, %arg1: memref<32x128xf32, #tpu.memory_space<vmem>>, %arg2: memref<3x128x128xf32, #tpu.memory_space<vmem>>, %arg3: memref<1x128xf32, #tpu.memory_space<vmem>>, %arg4: memref<3x128x128xf32, #tpu.memory_space<vmem>>, %arg5: memref<1x128xf32, #tpu.memory_space<vmem>>, %arg6: memref<32x1xf32, #tpu.memory_space<vmem>>, %arg7: memref<32x1xf32, #tpu.memory_space<vmem>>, %arg8: memref<32x128xf32, #tpu.memory_space<vmem>>) attributes {dimension_semantics = [#tpu.dimension_semantics<parallel>], iteration_bounds = array<i64: 2>, scalar_prefetch = 0 : i64, scratch_operands = 0 : i64, tpu.core_type = #tpu.core_type<tc>, window_params = [{transform_indices = @transform_0, window_bounds = array<i64: 32, 128>}, {pipeline_mode = #tpu.pipeline_mode<synchronous>, transform_indices = @transform_1, window_bounds = array<i64: 3, 128, 128>}, {pipeline_mode = #tpu.pipeline_mode<synchronous>, transform_indices = @transform_2, window_bounds = array<i64: 1, 128>}, {pipeline_mode = #tpu.pipeline_mode<synchronous>, transform_indices = @transform_3, window_bounds = array<i64: 3, 128, 128>}, {pipeline_mode = #tpu.pipeline_mode<synchronous>, transform_indices = @transform_4, window_bounds = array<i64: 1, 128>}, {pipeline_mode = #tpu.pipeline_mode<synchronous>, transform_indices = @transform_5, window_bounds = array<i64: 32, 1>}, {pipeline_mode = #tpu.pipeline_mode<synchronous>, transform_indices = @transform_6, window_bounds = array<i64: 32, 1>}, {transform_indices = @transform_7, window_bounds = array<i64: 32, 128>}]} {
    %c0 = arith.constant 0 : index
    %c0_0 = arith.constant 0 : index
    %0 = vector.load %arg1[%c0, %c0_0] : memref<32x128xf32, #tpu.memory_space<vmem>>, vector<32x128xf32>
    %c0_1 = arith.constant 0 : index
    %c0_2 = arith.constant 0 : index
    %1 = vector.load %arg6[%c0_1, %c0_2] : memref<32x1xf32, #tpu.memory_space<vmem>>, vector<32x1xf32>
    %c0_3 = arith.constant 0 : index
    %c0_4 = arith.constant 0 : index
    %2 = vector.load %arg7[%c0_3, %c0_4] : memref<32x1xf32, #tpu.memory_space<vmem>>, vector<32x1xf32>
    %c1_i32 = arith.constant 1 : i32
    %3 = tpu.dynamic_rotate %0 by %c1_i32 dim 0 : vector<32x128xf32>, i32 -> vector<32x128xf32>
    %4 = vector.broadcast %1 : vector<32x1xf32> to vector<32x128xf32>
    %5 = arith.mulf %3, %4 : vector<32x128xf32>
    %c31_i32 = arith.constant 31 : i32
    %6 = tpu.dynamic_rotate %0 by %c31_i32 dim 0 : vector<32x128xf32>, i32 -> vector<32x128xf32>
    %7 = vector.broadcast %2 : vector<32x1xf32> to vector<32x128xf32>
    %8 = arith.mulf %6, %7 : vector<32x128xf32>
    %c0_5 = arith.constant 0 : index
    %c0_6 = arith.constant 0 : index
    %c0_7 = arith.constant 0 : index
    %9 = vector.load %arg2[%c0_5, %c0_6, %c0_7] : memref<3x128x128xf32, #tpu.memory_space<vmem>>, vector<1x128x128xf32>
    %10 = vector.shape_cast %9 : vector<1x128x128xf32> to vector<128x128xf32>
    %cst = arith.constant dense<0.000000e+00> : vector<32x128xf32>
    %11 = tpu.matmul %5, %10, %cst {dimension_numbers = #tpu.dot_dimension_numbers<[1], [0], [0], [1], [0, 0, 1, 1], [], []>} : vector<32x128xf32>, vector<128x128xf32>, vector<32x128xf32> -> vector<32x128xf32>
    %c1 = arith.constant 1 : index
    %c0_8 = arith.constant 0 : index
    %c0_9 = arith.constant 0 : index
    %12 = vector.load %arg2[%c1, %c0_8, %c0_9] : memref<3x128x128xf32, #tpu.memory_space<vmem>>, vector<1x128x128xf32>
    %13 = vector.shape_cast %12 : vector<1x128x128xf32> to vector<128x128xf32>
    %cst_10 = arith.constant dense<0.000000e+00> : vector<32x128xf32>
    %14 = tpu.matmul %0, %13, %cst_10 {dimension_numbers = #tpu.dot_dimension_numbers<[1], [0], [0], [1], [0, 0, 1, 1], [], []>} : vector<32x128xf32>, vector<128x128xf32>, vector<32x128xf32> -> vector<32x128xf32>
    %15 = arith.addf %11, %14 : vector<32x128xf32>
    %c2 = arith.constant 2 : index
    %c0_11 = arith.constant 0 : index
    %c0_12 = arith.constant 0 : index
    %16 = vector.load %arg2[%c2, %c0_11, %c0_12] : memref<3x128x128xf32, #tpu.memory_space<vmem>>, vector<1x128x128xf32>
    %17 = vector.shape_cast %16 : vector<1x128x128xf32> to vector<128x128xf32>
    %cst_13 = arith.constant dense<0.000000e+00> : vector<32x128xf32>
    %18 = tpu.matmul %8, %17, %cst_13 {dimension_numbers = #tpu.dot_dimension_numbers<[1], [0], [0], [1], [0, 0, 1, 1], [], []>} : vector<32x128xf32>, vector<128x128xf32>, vector<32x128xf32> -> vector<32x128xf32>
    %19 = arith.addf %15, %18 : vector<32x128xf32>
    %c0_14 = arith.constant 0 : index
    %c0_15 = arith.constant 0 : index
    %20 = vector.load %arg3[%c0_14, %c0_15] : memref<1x128xf32, #tpu.memory_space<vmem>>, vector<1x128xf32>
    %21 = vector.broadcast %20 : vector<1x128xf32> to vector<32x128xf32>
    %22 = arith.addf %19, %21 : vector<32x128xf32>
    %cst_16 = arith.constant 0.000000e+00 : f32
    %23 = vector.broadcast %cst_16 : f32 to vector<32x128xf32>
    %24 = arith.maximumf %22, %23 : vector<32x128xf32>
    %c1_i32_17 = arith.constant 1 : i32
    %25 = tpu.dynamic_rotate %24 by %c1_i32_17 dim 0 : vector<32x128xf32>, i32 -> vector<32x128xf32>
    %26 = vector.broadcast %1 : vector<32x1xf32> to vector<32x128xf32>
    %27 = arith.mulf %25, %26 : vector<32x128xf32>
    %c31_i32_18 = arith.constant 31 : i32
    %28 = tpu.dynamic_rotate %24 by %c31_i32_18 dim 0 : vector<32x128xf32>, i32 -> vector<32x128xf32>
    %29 = vector.broadcast %2 : vector<32x1xf32> to vector<32x128xf32>
    %30 = arith.mulf %28, %29 : vector<32x128xf32>
    %c0_19 = arith.constant 0 : index
    %c0_20 = arith.constant 0 : index
    %c0_21 = arith.constant 0 : index
    %31 = vector.load %arg4[%c0_19, %c0_20, %c0_21] : memref<3x128x128xf32, #tpu.memory_space<vmem>>, vector<1x128x128xf32>
    %32 = vector.shape_cast %31 : vector<1x128x128xf32> to vector<128x128xf32>
    %cst_22 = arith.constant dense<0.000000e+00> : vector<32x128xf32>
    %33 = tpu.matmul %27, %32, %cst_22 {dimension_numbers = #tpu.dot_dimension_numbers<[1], [0], [0], [1], [0, 0, 1, 1], [], []>} : vector<32x128xf32>, vector<128x128xf32>, vector<32x128xf32> -> vector<32x128xf32>
    %c1_23 = arith.constant 1 : index
    %c0_24 = arith.constant 0 : index
    %c0_25 = arith.constant 0 : index
    %34 = vector.load %arg4[%c1_23, %c0_24, %c0_25] : memref<3x128x128xf32, #tpu.memory_space<vmem>>, vector<1x128x128xf32>
    %35 = vector.shape_cast %34 : vector<1x128x128xf32> to vector<128x128xf32>
    %cst_26 = arith.constant dense<0.000000e+00> : vector<32x128xf32>
    %36 = tpu.matmul %24, %35, %cst_26 {dimension_numbers = #tpu.dot_dimension_numbers<[1], [0], [0], [1], [0, 0, 1, 1], [], []>} : vector<32x128xf32>, vector<128x128xf32>, vector<32x128xf32> -> vector<32x128xf32>
    %37 = arith.addf %33, %36 : vector<32x128xf32>
    %c2_27 = arith.constant 2 : index
    %c0_28 = arith.constant 0 : index
    %c0_29 = arith.constant 0 : index
    %38 = vector.load %arg4[%c2_27, %c0_28, %c0_29] : memref<3x128x128xf32, #tpu.memory_space<vmem>>, vector<1x128x128xf32>
    %39 = vector.shape_cast %38 : vector<1x128x128xf32> to vector<128x128xf32>
    %cst_30 = arith.constant dense<0.000000e+00> : vector<32x128xf32>
    %40 = tpu.matmul %30, %39, %cst_30 {dimension_numbers = #tpu.dot_dimension_numbers<[1], [0], [0], [1], [0, 0, 1, 1], [], []>} : vector<32x128xf32>, vector<128x128xf32>, vector<32x128xf32> -> vector<32x128xf32>
    %41 = arith.addf %37, %40 : vector<32x128xf32>
    %c0_31 = arith.constant 0 : index
    %c0_32 = arith.constant 0 : index
    %42 = vector.load %arg5[%c0_31, %c0_32] : memref<1x128xf32, #tpu.memory_space<vmem>>, vector<1x128xf32>
    %43 = vector.broadcast %42 : vector<1x128xf32> to vector<32x128xf32>
    %44 = arith.addf %41, %43 : vector<32x128xf32>
    %45 = arith.addf %44, %0 : vector<32x128xf32>
    %c0_33 = arith.constant 0 : index
    %c0_34 = arith.constant 0 : index
    %46 = vector.load %arg8[%c0_33, %c0_34] : memref<32x128xf32, #tpu.memory_space<vmem>>, vector<32x128xf32>
    tpu.vector_store %arg8[%c0_33, %c0_34], %45 {strides = array<i32>} : memref<32x128xf32, #tpu.memory_space<vmem>>, vector<32x128xf32>,
    return
  }
  func.func @transform_0(%arg0: i32) -> (i32, i32) {
    %c0_i32 = arith.constant 0 : i32
    %c0_i32_0 = arith.constant 0 : i32
    return %arg0, %c0_i32 : i32, i32
  }
  func.func @transform_1(%arg0: i32) -> (i32, i32, i32) {
    %c0_i32 = arith.constant 0 : i32
    %c0_i32_0 = arith.constant 0 : i32
    %c0_i32_1 = arith.constant 0 : i32
    %c0_i32_2 = arith.constant 0 : i32
    return %c0_i32, %c0_i32_0, %c0_i32_1 : i32, i32, i32
  }
  func.func @transform_2(%arg0: i32) -> (i32, i32) {
    %c0_i32 = arith.constant 0 : i32
    %c0_i32_0 = arith.constant 0 : i32
    %c0_i32_1 = arith.constant 0 : i32
    return %c0_i32, %c0_i32_0 : i32, i32
  }
  func.func @transform_3(%arg0: i32) -> (i32, i32, i32) {
    %c0_i32 = arith.constant 0 : i32
    %c0_i32_0 = arith.constant 0 : i32
    %c0_i32_1 = arith.constant 0 : i32
    %c0_i32_2 = arith.constant 0 : i32
    return %c0_i32, %c0_i32_0, %c0_i32_1 : i32, i32, i32
  }
  func.func @transform_4(%arg0: i32) -> (i32, i32) {
    %c0_i32 = arith.constant 0 : i32
    %c0_i32_0 = arith.constant 0 : i32
    %c0_i32_1 = arith.constant 0 : i32
    return %c0_i32, %c0_i32_0 : i32, i32
  }
  func.func @transform_5(%arg0: i32) -> (i32, i32) {
    %c0_i32 = arith.constant 0 : i32
    %c0_i32_0 = arith.constant 0 : i32
    %c0_i32_1 = arith.constant 0 : i32
    return %c0_i32, %c0_i32_0 : i32, i32
  }
  func.func @transform_6(%arg0: i32) -> (i32, i32) {
    %c0_i32 = arith.constant 0 : i32
    %c0_i32_0 = arith.constant 0 : i32
    %c0_i32_1 = arith.constant 0 : i32
    return %c0_i32, %c0_i32_0 : i32, i32
  }
  func.func @transform_7(%arg0: i32) -> (i32, i32) {
    %c0_i32 = arith.constant 0 : i32
    %c0_i32_0 = arith.constant 0 : i32
    return %arg0, %c0_i32 : i32, i32
  }
}

</mosaic_0001>

<llo_original>
// kernel: tpu_custom_call.1
$region0: #{tpu_custom_call.1}
  #allocation0 [shape = 'u32[]', space=smem, size = 0x4, offset = 0x4, fixed_abs, tag = 'smem constant byte address 0x4 - core index']
  #allocation1 [shape = 'u32[144,128]{1,0:T(1,128)}', space=vmem, size = 0x12000, scoped, tag = 'internal scratch']
  %s0 = inlined_call_operand.vmem [shape: f32[64,128], index: 0, kind: input, shape index: {}]
  %s1 = inlined_call_operand.hbm [shape: f32[3,128,128], index: 1, kind: input, shape index: {}]
  %s2 = inlined_call_operand.vmem [shape: f32[1,128], index: 2, kind: input, shape index: {}]
  %s3 = inlined_call_operand.hbm [shape: f32[3,128,128], index: 3, kind: input, shape index: {}]
  %s4 = inlined_call_operand.vmem [shape: f32[1,128], index: 4, kind: input, shape index: {}]
  %s5 = inlined_call_operand.vmem [shape: f32[32,1], index: 5, kind: input, shape index: {}]
  %s6 = inlined_call_operand.vmem [shape: f32[32,1], index: 6, kind: input, shape index: {}]
  %s7 = inlined_call_operand.hbm [shape: f32[64,128], index: 7, kind: output, shape index: {}]
  %s8 = sld [smem:[#allocation0]]
  $region69: #{tpu_custom_call.1} parent=0
    _
  %s10 = ssub.s32 1, %s8
  %s11 = scalar_select 0, %s10, %s8
  $region1: #{tpu_custom_call.1} parent=0
    #allocation2 [shape = 'u8[196608]{0}', space=vmem, size = 0x30000, scoped, tag = 'input window, operand 1, single buffered']
    #allocation3 [shape = 's32[2]{0}', space=sflag, size = 0x8, scoped, tag = 'scoped memory for tpu_custom_call.1']
    #allocation4 [shape = 's32[2]{0}', space=sflag, size = 0x8, scoped, tag = 'scoped memory for tpu_custom_call.1']
    #allocation5 [shape = 'u8[196608]{0}', space=vmem, size = 0x30000, scoped, tag = 'input window, operand 3, single buffered']
    #allocation6 [shape = 's32[1]{0}', space=sflag, size = 0x4, scoped, tag = 'scoped memory for tpu_custom_call.1']
    #allocation7 [shape = 'u8[32768]{0}', space=vmem, size = 0x8000, scoped, tag = 'output window, operand 0']
    %12 = vsyncpa [#allocation3], 0
    %13 = vsyncpa [#allocation6], 0
    %14 = vsyncpa [#allocation4], 0
    %s15 = scalar_lea.sflag [#allocation4], 1
    %16 = vsyncpa %s15, 0
    loop: start=0, step=1, limit=4
    $region2: #{tpu_custom_call.1} parent=1 // loop_pre_header
      _
    $region3: #{tpu_custom_call.1} parent=1 // loop_header
      %s18 = sphi 0, %s22
      %p19 = scmp.ge.s32.totalorder %s18, 4
      %s28 = sphi 0, %s30
      %s31 = sphi 0, %s28
      %s32 = sphi 0, %s31
      %s48 = sphi 0, %s32
      %s52 = sphi 0, %s52
      %s54 = sphi 0, %s52
      %s55 = sphi 0, %s54
      %s69 = sphi 0, %s55
      %s73 = sphi 0, %s73
      %s75 = sphi 0, %s73
      %s76 = sphi 0, %s75
      %s90 = sphi 0, %s76
      %s94 = sphi 0, %s94
      %s96 = sphi 0, %s94
      %s97 = sphi 0, %s96
      %s111 = sphi 0, %s97
      %s115 = sphi 0, %s115
      %s117 = sphi 0, %s115
      %s118 = sphi 0, %s117
      %s132 = sphi 0, %s118
      %s136 = sphi 0, %s136
      %s138 = sphi 0, %s136
      %s139 = sphi 0, %s138
      %s153 = sphi 0, %s139
      %s157 = sphi 0, %s157
      %s159 = sphi 0, %s157
      %s160 = sphi 0, %s159
      %s174 = sphi 0, %s160
      %s180 = sphi 0, %s182
      %s183 = sphi 0, %s180
      %s184 = sphi 0, %s183
      %s200 = sphi 0, %s184
    $region4: #{tpu_custom_call.1} parent=1 // loop_header_branch
      %21 = sbr.rel (%p19) target = $region8
    $region5: #{tpu_custom_call.1} parent=1 // loop_body
      %s23 = ssub.s32 %s18, 1
      %s24 = ssub.s32 %s18, 2
      %s25 = sadd.s32 %s18, 1
      %s26 = ssub.s32 %s18, %s25
      %p27 = scmp.eq.s32.totalorder %s26, 0
      %s29 = sadd.s32 %s28, 1
      %s30 = scalar_select %p27, %s28, %s29
      %p33 = pneg %p27
      %p34 = scmp.eq.s32.totalorder %s18, 1
      %p35 = por %p33, %p34
      %p36 = scmp.ne.s32.totalorder %s28, %s31
      %p37 = scmp.eq.s32.totalorder %s18, 0
      %p38 = por %p36, %p37
      %p39 = scmp.ne.s32.totalorder %s28, %s31
      %p40 = scmp.eq.s32.totalorder %s23, 1
      %p41 = por %p39, %p40
      %p42 = scmp.ne.s32.totalorder %s31, %s32
      %p43 = scmp.eq.s32.totalorder %s23, 0
      %p44 = por %p42, %p43
      %p45 = scmp.ne.s32.totalorder %s31, %s32
      %p46 = scmp.eq.s32.totalorder %s24, 1
      %p47 = por %p45, %p46
      %p49 = scmp.ne.s32.totalorder %s32, %s48
      %p50 = scmp.eq.s32.totalorder %s24, 0
      %p51 = por %p49, %p50
      %s53 = sadd.s32 %s52, 1
      %p56 = scmp.eq.s32.totalorder %s18, 1
      %p57 = scmp.ne.s32.totalorder %s52, %s54
      %p58 = scmp.eq.s32.totalorder %s18, 0
      %p59 = por %p57, %p58
      %p60 = scmp.ne.s32.totalorder %s52, %s54
      %p61 = scmp.eq.s32.totalorder %s23, 1
      %p62 = por %p60, %p61
      %p63 = scmp.ne.s32.totalorder %s54, %s55
      %p64 = scmp.eq.s32.totalorder %s23, 0
      %p65 = por %p63, %p64
      %p66 = scmp.ne.s32.totalorder %s54, %s55
      %p67 = scmp.eq.s32.totalorder %s24, 1
      %p68 = por %p66, %p67
      %p70 = scmp.ne.s32.totalorder %s55, %s69
      %p71 = scmp.eq.s32.totalorder %s24, 0
      %p72 = por %p70, %p71
      %s74 = sadd.s32 %s73, 1
      %p77 = scmp.eq.s32.totalorder %s18, 1
      %p78 = scmp.ne.s32.totalorder %s73, %s75
      %p79 = scmp.eq.s32.totalorder %s18, 0
      %p80 = por %p78, %p79
      %p81 = scmp.ne.s32.totalorder %s73, %s75
      %p82 = scmp.eq.s32.totalorder %s23, 1
      %p83 = por %p81, %p82
      %p84 = scmp.ne.s32.totalorder %s75, %s76
      %p85 = scmp.eq.s32.totalorder %s23, 0
      %p86 = por %p84, %p85
      %p87 = scmp.ne.s32.totalorder %s75, %s76
      %p88 = scmp.eq.s32.totalorder %s24, 1
      %p89 = por %p87, %p88
      %p91 = scmp.ne.s32.totalorder %s76, %s90
      %p92 = scmp.eq.s32.totalorder %s24, 0
      %p93 = por %p91, %p92
      %s95 = sadd.s32 %s94, 1
      %p98 = scmp.eq.s32.totalorder %s18, 1
      %p99 = scmp.ne.s32.totalorder %s94, %s96
      %p100 = scmp.eq.s32.totalorder %s18, 0
      %p101 = por %p99, %p100
      %p102 = scmp.ne.s32.totalorder %s94, %s96
      %p103 = scmp.eq.s32.totalorder %s23, 1
      %p104 = por %p102, %p103
      %p105 = scmp.ne.s32.totalorder %s96, %s97
      %p106 = scmp.eq.s32.totalorder %s23, 0
      %p107 = por %p105, %p106
      %p108 = scmp.ne.s32.totalorder %s96, %s97
      %p109 = scmp.eq.s32.totalorder %s24, 1
      %p110 = por %p108, %p109
      %p112 = scmp.ne.s32.totalorder %s97, %s111
      %p113 = scmp.eq.s32.totalorder %s24, 0
      %p114 = por %p112, %p113
      %s116 = sadd.s32 %s115, 1
      %p119 = scmp.eq.s32.totalorder %s18, 1
      %p120 = scmp.ne.s32.totalorder %s115, %s117
      %p121 = scmp.eq.s32.totalorder %s18, 0
      %p122 = por %p120, %p121
      %p123 = scmp.ne.s32.totalorder %s115, %s117
      %p124 = scmp.eq.s32.totalorder %s23, 1
      %p125 = por %p123, %p124
      %p126 = scmp.ne.s32.totalorder %s117, %s118
      %p127 = scmp.eq.s32.totalorder %s23, 0
      %p128 = por %p126, %p127
      %p129 = scmp.ne.s32.totalorder %s117, %s118
      %p130 = scmp.eq.s32.totalorder %s24, 1
      %p131 = por %p129, %p130
      %p133 = scmp.ne.s32.totalorder %s118, %s132
      %p134 = scmp.eq.s32.totalorder %s24, 0
      %p135 = por %p133, %p134
      %s137 = sadd.s32 %s136, 1
      %p140 = scmp.eq.s32.totalorder %s18, 1
      %p141 = scmp.ne.s32.totalorder %s136, %s138
      %p142 = scmp.eq.s32.totalorder %s18, 0
      %p143 = por %p141, %p142
      %p144 = scmp.ne.s32.totalorder %s136, %s138
      %p145 = scmp.eq.s32.totalorder %s23, 1
      %p146 = por %p144, %p145
      %p147 = scmp.ne.s32.totalorder %s138, %s139
      %p148 = scmp.eq.s32.totalorder %s23, 0
      %p149 = por %p147, %p148
      %p150 = scmp.ne.s32.totalorder %s138, %s139
      %p151 = scmp.eq.s32.totalorder %s24, 1
      %p152 = por %p150, %p151
      %p154 = scmp.ne.s32.totalorder %s139, %s153
      %p155 = scmp.eq.s32.totalorder %s24, 0
      %p156 = por %p154, %p155
      %s158 = sadd.s32 %s157, 1
      %p161 = scmp.eq.s32.totalorder %s18, 1
      %p162 = scmp.ne.s32.totalorder %s157, %s159
      %p163 = scmp.eq.s32.totalorder %s18, 0
      %p164 = por %p162, %p163
      %p165 = scmp.ne.s32.totalorder %s157, %s159
      %p166 = scmp.eq.s32.totalorder %s23, 1
      %p167 = por %p165, %p166
      %p168 = scmp.ne.s32.totalorder %s159, %s160
      %p169 = scmp.eq.s32.totalorder %s23, 0
      %p170 = por %p168, %p169
      %p171 = scmp.ne.s32.totalorder %s159, %s160
      %p172 = scmp.eq.s32.totalorder %s24, 1
      %p173 = por %p171, %p172
      %p175 = scmp.ne.s32.totalorder %s160, %s174
      %p176 = scmp.eq.s32.totalorder %s24, 0
      %p177 = por %p175, %p176
      %s178 = ssub.s32 %s18, %s25
      %p179 = scmp.eq.s32.totalorder %s178, 0
      %s181 = sadd.s32 %s180, 1
      %s182 = scalar_select %p179, %s180, %s181
      %p185 = pneg %p179
      %p186 = scmp.eq.s32.totalorder %s18, 1
      %p187 = por %p185, %p186
      %p188 = scmp.ne.s32.totalorder %s180, %s183
      %p189 = scmp.eq.s32.totalorder %s18, 0
      %p190 = por %p188, %p189
      %p191 = scmp.ne.s32.totalorder %s180, %s183
      %p192 = scmp.eq.s32.totalorder %s23, 1
      %p193 = por %p191, %p192
      %p194 = scmp.ne.s32.totalorder %s183, %s184
      %p195 = scmp.eq.s32.totalorder %s23, 0
      %p196 = por %p194, %p195
      %p197 = scmp.ne.s32.totalorder %s183, %s184
      %p198 = scmp.eq.s32.totalorder %s24, 1
      %p199 = por %p197, %p198
      %p201 = scmp.ne.s32.totalorder %s184, %s200
      %p202 = scmp.eq.s32.totalorder %s24, 0
      %p203 = por %p201, %p202
      %p204 = scmp.le.s32.totalorder 1, %s18
      %p205 = scmp.lt.s32.totalorder %s18, 3
      %p206 = pnand %p204, %p205
      %p207 = pneg %p206
      // Predicated region
      $region9: #{tpu_custom_call.1} parent=5 // pred_check
        _
      $region10: #{tpu_custom_call.1} parent=5 // pred_check_branch
        %209 = sbr.rel (%p206) target = $region12
      $region11: #{tpu_custom_call.1} parent=5 // pred_region
        %s210 = ssub.s32 %s18, 1
        // Predicated region
        $region13: #{tpu_custom_call.1} parent=11 // pred_check
          %p211 = pneg %p65
        $region14: #{tpu_custom_call.1} parent=11 // pred_check_branch
          %213 = sbr.rel (%p211) target = $region16
        $region15: #{tpu_custom_call.1} parent=11 // pred_region
          %s215 = ssub.s32 6144, 6144
          %216 = vsyncadd [#allocation3], %s215
          %s217 = sshll.u32 [#allocation2], 4
          %s218 = int_to_ptr.vmem [resolvable:$true] %s217
          %223 = dma.hbm_to_vmem [thread:$0]  %s1, 6144, %s218, [#allocation3], 128, 128, 8
        $region16: #{tpu_custom_call.1} parent=11 // pred_fallthru
          _
        // Predicated region
        $region17: #{tpu_custom_call.1} parent=11 // pred_check
          %p224 = pneg %p86
        $region18: #{tpu_custom_call.1} parent=11 // pred_check_branch
          %226 = sbr.rel (%p224) target = $region20
        $region19: #{tpu_custom_call.1} parent=11 // pred_region
          _
        $region20: #{tpu_custom_call.1} parent=11 // pred_fallthru
          _
        // Predicated region
        $region21: #{tpu_custom_call.1} parent=11 // pred_check
          %p227 = pneg %p107
        $region22: #{tpu_custom_call.1} parent=11 // pred_check_branch
          %229 = sbr.rel (%p227) target = $region24
        $region23: #{tpu_custom_call.1} parent=11 // pred_region
          %s231 = ssub.s32 6144, 6144
          %232 = vsyncadd [#allocation6], %s231
          %s233 = sshll.u32 [#allocation5], 4
          %s234 = int_to_ptr.vmem [resolvable:$true] %s233
          %239 = dma.hbm_to_vmem [thread:$0]  %s3, 6144, %s234, [#allocation6], 128, 128, 8
        $region24: #{tpu_custom_call.1} parent=11 // pred_fallthru
          _
        // Predicated region
        $region25: #{tpu_custom_call.1} parent=11 // pred_check
          %p240 = pneg %p128
        $region26: #{tpu_custom_call.1} parent=11 // pred_check_branch
          %242 = sbr.rel (%p240) target = $region28
        $region27: #{tpu_custom_call.1} parent=11 // pred_region
          _
        $region28: #{tpu_custom_call.1} parent=11 // pred_fallthru
          _
        // Predicated region
        $region29: #{tpu_custom_call.1} parent=11 // pred_check
          %p243 = pneg %p149
        $region30: #{tpu_custom_call.1} parent=11 // pred_check_branch
          %245 = sbr.rel (%p243) target = $region32
        $region31: #{tpu_custom_call.1} parent=11 // pred_region
          _
        $region32: #{tpu_custom_call.1} parent=11 // pred_fallthru
          _
        // Predicated region
        $region33: #{tpu_custom_call.1} parent=11 // pred_check
          %p246 = pneg %p170
        $region34: #{tpu_custom_call.1} parent=11 // pred_check_branch
          %248 = sbr.rel (%p246) target = $region36
        $region35: #{tpu_custom_call.1} parent=11 // pred_region
          _
        $region36: #{tpu_custom_call.1} parent=11 // pred_fallthru
          _
      $region12: #{tpu_custom_call.1} parent=5 // pred_fallthru
        _
      %p249 = scmp.lt.s32.totalorder %s18, 2
      // Predicated region
      $region37: #{tpu_custom_call.1} parent=5 // pred_check
        %p250 = pneg %p249
      $region38: #{tpu_custom_call.1} parent=5 // pred_check_branch
        %252 = sbr.rel (%p250) target = $region40
      $region39: #{tpu_custom_call.1} parent=5 // pred_region
        // Predicated region
        $region41: #{tpu_custom_call.1} parent=39 // pred_check
          %p253 = pneg %p38
        $region42: #{tpu_custom_call.1} parent=39 // pred_check_branch
          %255 = sbr.rel (%p253) target = $region44
        $region43: #{tpu_custom_call.1} parent=39 // pred_region
          %s256 = smul.u32 4, %s18
          %p257 = scmp.lt.s32.totalorder %s256, 7
          %s258 = scalar_select %p257, %s256, 7
          %s259 = smul.addr %s258, 8
          %s260 = scalar_lea.vmem %s0, %s259
          %s261 = smul.u32 4, %s18
        $region44: #{tpu_custom_call.1} parent=39 // pred_fallthru
          _
      $region40: #{tpu_custom_call.1} parent=5 // pred_fallthru
        _
      %p262 = scmp.le.s32.totalorder 1, %s18
      %p263 = scmp.lt.s32.totalorder %s18, 3
      %p264 = pnand %p262, %p263
      %p265 = pneg %p264
      // Predicated region
      $region45: #{tpu_custom_call.1} parent=5 // pred_check
        _
      $region46: #{tpu_custom_call.1} parent=5 // pred_check_branch
        %267 = sbr.rel (%p264) target = $region48
      $region47: #{tpu_custom_call.1} parent=5 // pred_region
        %s268 = ssub.s32 %s18, 1
        // Predicated region
        $region49: #{tpu_custom_call.1} parent=47 // pred_check
          %p269 = pneg %p65
        $region50: #{tpu_custom_call.1} parent=47 // pred_check_branch
          %271 = sbr.rel (%p269) target = $region52
        $region51: #{tpu_custom_call.1} parent=47 // pred_region
          %272 = dma.done [#allocation3], 6144
        $region52: #{tpu_custom_call.1} parent=47 // pred_fallthru
          _
        // Predicated region
        $region53: #{tpu_custom_call.1} parent=47 // pred_check
          %p273 = pneg %p107
        $region54: #{tpu_custom_call.1} parent=47 // pred_check_branch
          %275 = sbr.rel (%p273) target = $region56
        $region55: #{tpu_custom_call.1} parent=47 // pred_region
          %276 = dma.done [#allocation6], 6144
        $region56: #{tpu_custom_call.1} parent=47 // pred_fallthru
          _
        %s277 = smul.u32 4, %s23
        %p278 = scmp.lt.s32.totalorder %s277, 7
        %s279 = scalar_select %p278, %s277, 7
        %s280 = smul.addr %s279, 8
        %s281 = scalar_lea.vmem %s0, %s280
        %p282 = pneg %p44
        %p283 = pneg %p41
        %p284 = pneg %p65
        %p285 = pneg %p62
        %p286 = pneg %p86
        %p287 = pneg %p83
        %p288 = pneg %p107
        %p289 = pneg %p104
        %p290 = pneg %p128
        %p291 = pneg %p125
        %p292 = pneg %p149
        %p293 = pneg %p146
        %p294 = pneg %p170
        %p295 = pneg %p167
        %p296 = pneg %p196
        %p297 = pneg %p193
        %s298 = sand.u32 %s183, 1
        %s299 = scalar_lea.sflag [#allocation4], %s298
        %s300 = sand.u32 %s183, 1
        %s301 = smul.addr %s300, 32
        %s302 = scalar_lea.vmem [#allocation7], %s301
        %s303 = smul.u32 4, %s23
        %p304 = scmp.lt.s32.totalorder %s303, 7
        %s305 = scalar_select %p304, %s303, 7
        %s306 = smul.addr %s305, 8
        %s307 = scalar_lea.vmem %s0, %s306
        %s308 = smul.u32 4, %s23
        %s309 = smul.u32 4, %s23
        %v310 = vld [vmem:[%s307] sm:$0xff]
        %v311 = vld [vmem:[%s307 + $0x8] sm:$0xff]
        %v312 = vld [vmem:[%s307 + $0x10] sm:$0xff]
        %v313 = vld [vmem:[%s307 + $0x18] sm:$0xff]
        %v314 = vld [vmem:[%s5] sm:$0xff]
        %v315 = vld [vmem:[%s5 + $0x8] sm:$0xff]
        %v316 = vld [vmem:[%s5 + $0x10] sm:$0xff]
        %v317 = vld [vmem:[%s5 + $0x18] sm:$0xff]
        %v318 = vld [vmem:[%s6] sm:$0xff]
        %v319 = vld [vmem:[%s6 + $0x8] sm:$0xff]
        %v320 = vld [vmem:[%s6 + $0x10] sm:$0xff]
        %v321 = vld [vmem:[%s6 + $0x18] sm:$0xff]
        %v322 = vrot.slane %v310, 7
        %v323 = vrot.slane %v311, 7
        %v324 = vrot.slane %v312, 7
        %v325 = vrot.slane %v313, 7
        %v326 = vlaneseq
        %v327 = vshrl.u32 %v326, 7
        %vm328 = vcmp.lt.s32.totalorder %v327, 1
        %v329 = vsel %vm328, %v324, %v325
        %v330 = vsel %vm328, %v323, %v324
        %v331 = vsel %vm328, %v322, %v323
        %v332 = vsel %vm328, %v325, %v322
        %334 = vset.pattern.permute.xlu0 0
        %335 = vperm.xlu0 %334, %v314
        %v336 = vpop.permute.xlu0 %335
        %339 = vset.pattern.permute.xlu0 0
        %340 = vperm.xlu0 %339, %v315
        %v341 = vpop.permute.xlu0 %340
        %344 = vset.pattern.permute.xlu0 0
        %345 = vperm.xlu0 %344, %v316
        %v346 = vpop.permute.xlu0 %345
        %349 = vset.pattern.permute.xlu0 0
        %350 = vperm.xlu0 %349, %v317
        %v351 = vpop.permute.xlu0 %350
        %v353 = vmul.f32 %v332, %v336
        %v354 = vmul.f32 %v331, %v341
        %v355 = vmul.f32 %v330, %v346
        %v356 = vmul.f32 %v329, %v351
        %v357 = vrot.slane %v310, 1
        %v358 = vrot.slane %v311, 1
        %v359 = vrot.slane %v312, 1
        %v360 = vrot.slane %v313, 1
        %vm361 = vcmp.lt.s32.totalorder %v327, 7
        %v362 = vsel %vm361, %v359, %v360
        %v363 = vsel %vm361, %v358, %v359
        %v364 = vsel %vm361, %v357, %v358
        %v365 = vsel %vm361, %v360, %v357
        %367 = vset.pattern.permute.xlu0 0
        %368 = vperm.xlu0 %367, %v318
        %v369 = vpop.permute.xlu0 %368
        %372 = vset.pattern.permute.xlu0 0
        %373 = vperm.xlu0 %372, %v319
        %v374 = vpop.permute.xlu0 %373
        %377 = vset.pattern.permute.xlu0 0
        %378 = vperm.xlu0 %377, %v320
        %v379 = vpop.permute.xlu0 %378
        %382 = vset.pattern.permute.xlu0 0
        %383 = vperm.xlu0 %382, %v321
        %v384 = vpop.permute.xlu0 %383
        %v386 = vmul.f32 %v364, %v369
        %v387 = vmul.f32 %v363, %v374
        %v388 = vmul.f32 %v362, %v379
        %v389 = vmul.f32 %v365, %v384
        %v390 = vld [vmem:[#allocation2] sm:$0xff]
        %v391 = vld [vmem:[#allocation2 + $0x8] sm:$0xff]
        %v392 = vld [vmem:[#allocation2 + $0x10] sm:$0xff]
        %v393 = vld [vmem:[#allocation2 + $0x18] sm:$0xff]
        %v394 = vld [vmem:[#allocation2 + $0x20] sm:$0xff]
        %v395 = vld [vmem:[#allocation2 + $0x28] sm:$0xff]
        %v396 = vld [vmem:[#allocation2 + $0x30] sm:$0xff]
        %v397 = vld [vmem:[#allocation2 + $0x38] sm:$0xff]
        %v398 = vld [vmem:[#allocation2 + $0x40] sm:$0xff]
        %v399 = vld [vmem:[#allocation2 + $0x48] sm:$0xff]
        %v400 = vld [vmem:[#allocation2 + $0x50] sm:$0xff]
        %v401 = vld [vmem:[#allocation2 + $0x58] sm:$0xff]
        %v402 = vld [vmem:[#allocation2 + $0x60] sm:$0xff]
        %v403 = vld [vmem:[#allocation2 + $0x68] sm:$0xff]
        %v404 = vld [vmem:[#allocation2 + $0x70] sm:$0xff]
        %v405 = vld [vmem:[#allocation2 + $0x78] sm:$0xff]
        %s406 = scalar_lea.vmem [#allocation2], 128
        %v407 = vld [vmem:[%s406] sm:$0xff]
        %v408 = vld [vmem:[%s406 + $0x8] sm:$0xff]
        %v409 = vld [vmem:[%s406 + $0x10] sm:$0xff]
        %v410 = vld [vmem:[%s406 + $0x18] sm:$0xff]
        %v411 = vld [vmem:[%s406 + $0x20] sm:$0xff]
        %v412 = vld [vmem:[%s406 + $0x28] sm:$0xff]
        %v413 = vld [vmem:[%s406 + $0x30] sm:$0xff]
        %v414 = vld [vmem:[%s406 + $0x38] sm:$0xff]
        %v415 = vld [vmem:[%s406 + $0x40] sm:$0xff]
        %v416 = vld [vmem:[%s406 + $0x48] sm:$0xff]
        %v417 = vld [vmem:[%s406 + $0x50] sm:$0xff]
        %v418 = vld [vmem:[%s406 + $0x58] sm:$0xff]
        %v419 = vld [vmem:[%s406 + $0x60] sm:$0xff]
        %v420 = vld [vmem:[%s406 + $0x68] sm:$0xff]
        %v421 = vld [vmem:[%s406 + $0x70] sm:$0xff]
        %v422 = vld [vmem:[%s406 + $0x78] sm:$0xff]
        %423 = vmatprep.subr.mxu0 0.0
        %424 = vmatpush1.msra.mxu0 %v407
        %425 = vmatprep.subr.mxu0 0.0
        %426 = vmatpush1.msra.mxu0 %v408
        %427 = vmatprep.subr.mxu0 0.0
        %428 = vmatpush1.msra.mxu0 %v409
        %429 = vmatprep.subr.mxu0 0.0
        %430 = vmatpush1.msra.mxu0 %v410
        %431 = vmatprep.subr.mxu0 0.0
        %432 = vmatpush1.msra.mxu0 %v411
        %433 = vmatprep.subr.mxu0 0.0
        %434 = vmatpush1.msra.mxu0 %v412
        %435 = vmatprep.subr.mxu0 0.0
        %436 = vmatpush1.msra.mxu0 %v413
        %437 = vmatprep.subr.mxu0 0.0
        %438 = vmatpush1.msra.mxu0 %v414
        %439 = vmatprep.subr.mxu0 0.0
        %440 = vmatpush1.msra.mxu0 %v415
        %441 = vmatprep.subr.mxu0 0.0
        %442 = vmatpush1.msra.mxu0 %v416
        %443 = vmatprep.subr.mxu0 0.0
        %444 = vmatpush1.msra.mxu0 %v417
        %445 = vmatprep.subr.mxu0 0.0
        %446 = vmatpush1.msra.mxu0 %v418
        %447 = vmatprep.subr.mxu0 0.0
        %448 = vmatpush1.msra.mxu0 %v419
        %449 = vmatprep.subr.mxu0 0.0
        %450 = vmatpush1.msra.mxu0 %v420
        %451 = vmatprep.subr.mxu0 0.0
        %452 = vmatpush1.msra.mxu0 %v421
        %453 = vmatprep.subr.mxu0 0.0
        %454 = vmatpush1.msra.mxu0 %v422
        %455 = vmatprep.subr.mxu0 0.0
        %456 = vmatpush1.msra.mxu0 0.0
        %457 = vmatprep.subr.mxu0 0.0
        %458 = vmatpush1.msra.mxu0 0.0
        %459 = vmatprep.subr.mxu0 0.0
        %460 = vmatpush1.msra.mxu0 0.0
        %461 = vmatprep.subr.mxu0 0.0
        %462 = vmatpush1.msra.mxu0 0.0
        %463 = vmatprep.subr.mxu0 0.0
        %464 = vmatpush1.msra.mxu0 0.0
        %465 = vmatprep.subr.mxu0 0.0
        %466 = vmatpush1.msra.mxu0 0.0
        %467 = vmatprep.subr.mxu0 0.0
        %468 = vmatpush1.msra.mxu0 0.0
        %469 = vmatprep.subr.mxu0 0.0
        %470 = vmatpush1.msra.mxu0 0.0
        %471 = vmatprep.subr.mxu0 0.0
        %472 = vmatpush1.msra.mxu0 0.0
        %473 = vmatprep.subr.mxu0 0.0
        %474 = vmatpush1.msra.mxu0 0.0
        %475 = vmatprep.subr.mxu0 0.0
        %476 = vmatpush1.msra.mxu0 0.0
        %477 = vmatprep.subr.mxu0 0.0
        %478 = vmatpush1.msra.mxu0 0.0
        %479 = vmatprep.subr.mxu0 0.0
        %480 = vmatpush1.msra.mxu0 0.0
        %481 = vmatprep.subr.mxu0 0.0
        %482 = vmatpush1.msra.mxu0 0.0
        %483 = vmatprep.subr.mxu0 0.0
        %484 = vmatpush1.msra.mxu0 0.0
        %485 = vmatprep.subr.mxu0 0.0
        %486 = vmatpush1.msra.mxu0 0.0
        %487 = vmatprep.mubr.f32.mxu0 0.0
        %488 = vmatmul.mubr.f32.gmra.mrb[0].mxu0 %v310
        %v489 = vpop.f32.mrb[0].mxu0
        %v490 = vadd.f32 0.0, %v489
        %v491 = vpop.f32.mrb[0].mxu0
        %492 = vmatprep.mubr.f32.mxu0 0.0
        %493 = vmatmul.mubr.f32.gmra.mrb[0].mxu0 %v311
        %v494 = vpop.f32.mrb[0].mxu0
        %v495 = vadd.f32 0.0, %v494
        %v496 = vpop.f32.mrb[0].mxu0
        %497 = vmatprep.mubr.f32.mxu0 0.0
        %498 = vmatmul.mubr.f32.gmra.mrb[0].mxu0 %v312
        %v499 = vpop.f32.mrb[0].mxu0
        %v500 = vadd.f32 0.0, %v499
        %v501 = vpop.f32.mrb[0].mxu0
        %502 = vmatprep.mubr.f32.mxu0 0.0
        %503 = vmatmul.mubr.f32.gmra.mrb[0].mxu0 %v313
        %v504 = vpop.f32.mrb[0].mxu0
        %v505 = vadd.f32 0.0, %v504
        %v506 = vpop.f32.mrb[0].mxu0
        %507 = vdwg.mxu0
        %508 = vmatprep.subr.mxu0 0.0
        %509 = vmatpush1.msra.mxu0 %v390
        %510 = vmatprep.subr.mxu0 0.0
        %511 = vmatpush1.msra.mxu0 %v391
        %512 = vmatprep.subr.mxu0 0.0
        %513 = vmatpush1.msra.mxu0 %v392
        %514 = vmatprep.subr.mxu0 0.0
        %515 = vmatpush1.msra.mxu0 %v393
        %516 = vmatprep.subr.mxu0 0.0
        %517 = vmatpush1.msra.mxu0 %v394
        %518 = vmatprep.subr.mxu0 0.0
        %519 = vmatpush1.msra.mxu0 %v395
        %520 = vmatprep.subr.mxu0 0.0
        %521 = vmatpush1.msra.mxu0 %v396
        %522 = vmatprep.subr.mxu0 0.0
        %523 = vmatpush1.msra.mxu0 %v397
        %524 = vmatprep.subr.mxu0 0.0
        %525 = vmatpush1.msra.mxu0 %v398
        %526 = vmatprep.subr.mxu0 0.0
        %527 = vmatpush1.msra.mxu0 %v399
        %528 = vmatprep.subr.mxu0 0.0
        %529 = vmatpush1.msra.mxu0 %v400
        %530 = vmatprep.subr.mxu0 0.0
        %531 = vmatpush1.msra.mxu0 %v401
        %532 = vmatprep.subr.mxu0 0.0
        %533 = vmatpush1.msra.mxu0 %v402
        %534 = vmatprep.subr.mxu0 0.0
        %535 = vmatpush1.msra.mxu0 %v403
        %536 = vmatprep.subr.mxu0 0.0
        %537 = vmatpush1.msra.mxu0 %v404
        %538 = vmatprep.subr.mxu0 0.0
        %539 = vmatpush1.msra.mxu0 %v405
        %540 = vmatprep.subr.mxu0 0.0
        %541 = vmatpush1.msra.mxu0 0.0
        %542 = vmatprep.subr.mxu0 0.0
        %543 = vmatpush1.msra.mxu0 0.0
        %544 = vmatprep.subr.mxu0 0.0
        %545 = vmatpush1.msra.mxu0 0.0
        %546 = vmatprep.subr.mxu0 0.0
        %547 = vmatpush1.msra.mxu0 0.0
        %548 = vmatprep.subr.mxu0 0.0
        %549 = vmatpush1.msra.mxu0 0.0
        %550 = vmatprep.subr.mxu0 0.0
        %551 = vmatpush1.msra.mxu0 0.0
        %552 = vmatprep.subr.mxu0 0.0
        %553 = vmatpush1.msra.mxu0 0.0
        %554 = vmatprep.subr.mxu0 0.0
        %555 = vmatpush1.msra.mxu0 0.0
        %556 = vmatprep.subr.mxu0 0.0
        %557 = vmatpush1.msra.mxu0 0.0
        %558 = vmatprep.subr.mxu0 0.0
        %559 = vmatpush1.msra.mxu0 0.0
        %560 = vmatprep.subr.mxu0 0.0
        %561 = vmatpush1.msra.mxu0 0.0
        %562 = vmatprep.subr.mxu0 0.0
        %563 = vmatpush1.msra.mxu0 0.0
        %564 = vmatprep.subr.mxu0 0.0
        %565 = vmatpush1.msra.mxu0 0.0
        %566 = vmatprep.subr.mxu0 0.0
        %567 = vmatpush1.msra.mxu0 0.0
        %568 = vmatprep.subr.mxu0 0.0
        %569 = vmatpush1.msra.mxu0 0.0
        %570 = vmatprep.subr.mxu0 0.0
        %571 = vmatpush1.msra.mxu0 0.0
        %572 = vmatprep.mubr.f32.mxu0 0.0
        %573 = vmatmul.mubr.f32.gmra.mrb[0].mxu0 %v353
        %v574 = vpop.f32.mrb[0].mxu0
        %v575 = vadd.f32 %v490, %v574
        %v576 = vpop.f32.mrb[0].mxu0
        %577 = vmatprep.mubr.f32.mxu0 0.0
        %578 = vmatmul.mubr.f32.gmra.mrb[0].mxu0 %v354
        %v579 = vpop.f32.mrb[0].mxu0
        %v580 = vadd.f32 %v495, %v579
        %v581 = vpop.f32.mrb[0].mxu0
        %582 = vmatprep.mubr.f32.mxu0 0.0
        %583 = vmatmul.mubr.f32.gmra.mrb[0].mxu0 %v355
        %v584 = vpop.f32.mrb[0].mxu0
        %v585 = vadd.f32 %v500, %v584
        %v586 = vpop.f32.mrb[0].mxu0
        %587 = vmatprep.mubr.f32.mxu0 0.0
        %588 = vmatmul.mubr.f32.gmra.mrb[0].mxu0 %v356
        %v589 = vpop.f32.mrb[0].mxu0
        %v590 = vadd.f32 %v505, %v589
        %v591 = vpop.f32.mrb[0].mxu0
        %592 = vdwg.mxu0
        %s593 = scalar_lea.vmem [#allocation2], 256
        %v594 = vld [vmem:[%s593] sm:$0xff]
        %v595 = vld [vmem:[%s593 + $0x8] sm:$0xff]
        %v596 = vld [vmem:[%s593 + $0x10] sm:$0xff]
        %v597 = vld [vmem:[%s593 + $0x18] sm:$0xff]
        %v598 = vld [vmem:[%s593 + $0x20] sm:$0xff]
        %v599 = vld [vmem:[%s593 + $0x28] sm:$0xff]
        %v600 = vld [vmem:[%s593 + $0x30] sm:$0xff]
        %v601 = vld [vmem:[%s593 + $0x38] sm:$0xff]
        %v602 = vld [vmem:[%s593 + $0x40] sm:$0xff]
        %v603 = vld [vmem:[%s593 + $0x48] sm:$0xff]
        %v604 = vld [vmem:[%s593 + $0x50] sm:$0xff]
        %v605 = vld [vmem:[%s593 + $0x58] sm:$0xff]
        %v606 = vld [vmem:[%s593 + $0x60] sm:$0xff]
        %v607 = vld [vmem:[%s593 + $0x68] sm:$0xff]
        %v608 = vld [vmem:[%s593 + $0x70] sm:$0xff]
        %v609 = vld [vmem:[%s593 + $0x78] sm:$0xff]
        %610 = vmatprep.subr.mxu0 0.0
        %611 = vmatpush1.msra.mxu0 %v594
        %612 = vmatprep.subr.mxu0 0.0
        %613 = vmatpush1.msra.mxu0 %v595
        %614 = vmatprep.subr.mxu0 0.0
        %615 = vmatpush1.msra.mxu0 %v596
        %616 = vmatprep.subr.mxu0 0.0
        %617 = vmatpush1.msra.mxu0 %v597
        %618 = vmatprep.subr.mxu0 0.0
        %619 = vmatpush1.msra.mxu0 %v598
        %620 = vmatprep.subr.mxu0 0.0
        %621 = vmatpush1.msra.mxu0 %v599
        %622 = vmatprep.subr.mxu0 0.0
        %623 = vmatpush1.msra.mxu0 %v600
        %624 = vmatprep.subr.mxu0 0.0
        %625 = vmatpush1.msra.mxu0 %v601
        %626 = vmatprep.subr.mxu0 0.0
        %627 = vmatpush1.msra.mxu0 %v602
        %628 = vmatprep.subr.mxu0 0.0
        %629 = vmatpush1.msra.mxu0 %v603
        %630 = vmatprep.subr.mxu0 0.0
        %631 = vmatpush1.msra.mxu0 %v604
        %632 = vmatprep.subr.mxu0 0.0
        %633 = vmatpush1.msra.mxu0 %v605
        %634 = vmatprep.subr.mxu0 0.0
        %635 = vmatpush1.msra.mxu0 %v606
        %636 = vmatprep.subr.mxu0 0.0
        %637 = vmatpush1.msra.mxu0 %v607
        %638 = vmatprep.subr.mxu0 0.0
        %639 = vmatpush1.msra.mxu0 %v608
        %640 = vmatprep.subr.mxu0 0.0
        %641 = vmatpush1.msra.mxu0 %v609
        %642 = vmatprep.subr.mxu0 0.0
        %643 = vmatpush1.msra.mxu0 0.0
        %644 = vmatprep.subr.mxu0 0.0
        %645 = vmatpush1.msra.mxu0 0.0
        %646 = vmatprep.subr.mxu0 0.0
        %647 = vmatpush1.msra.mxu0 0.0
        %648 = vmatprep.subr.mxu0 0.0
        %649 = vmatpush1.msra.mxu0 0.0
        %650 = vmatprep.subr.mxu0 0.0
        %651 = vmatpush1.msra.mxu0 0.0
        %652 = vmatprep.subr.mxu0 0.0
        %653 = vmatpush1.msra.mxu0 0.0
        %654 = vmatprep.subr.mxu0 0.0
        %655 = vmatpush1.msra.mxu0 0.0
        %656 = vmatprep.subr.mxu0 0.0
        %657 = vmatpush1.msra.mxu0 0.0
        %658 = vmatprep.subr.mxu0 0.0
        %659 = vmatpush1.msra.mxu0 0.0
        %660 = vmatprep.subr.mxu0 0.0
        %661 = vmatpush1.msra.mxu0 0.0
        %662 = vmatprep.subr.mxu0 0.0
        %663 = vmatpush1.msra.mxu0 0.0
        %664 = vmatprep.subr.mxu0 0.0
        %665 = vmatpush1.msra.mxu0 0.0
        %666 = vmatprep.subr.mxu0 0.0
        %667 = vmatpush1.msra.mxu0 0.0
        %668 = vmatprep.subr.mxu0 0.0
        %669 = vmatpush1.msra.mxu0 0.0
        %670 = vmatprep.subr.mxu0 0.0
        %671 = vmatpush1.msra.mxu0 0.0
        %672 = vmatprep.subr.mxu0 0.0
        %673 = vmatpush1.msra.mxu0 0.0
        %674 = vmatprep.mubr.f32.mxu0 0.0
        %675 = vmatmul.mubr.f32.gmra.mrb[0].mxu0 %v386
        %v676 = vpop.f32.mrb[0].mxu0
        %v677 = vadd.f32 0.0, %v676
        %v678 = vpop.f32.mrb[0].mxu0
        %679 = vmatprep.mubr.f32.mxu0 0.0
        %680 = vmatmul.mubr.f32.gmra.mrb[0].mxu0 %v387
        %v681 = vpop.f32.mrb[0].mxu0
        %v682 = vadd.f32 0.0, %v681
        %v683 = vpop.f32.mrb[0].mxu0
        %684 = vmatprep.mubr.f32.mxu0 0.0
        %685 = vmatmul.mubr.f32.gmra.mrb[0].mxu0 %v388
        %v686 = vpop.f32.mrb[0].mxu0
        %v687 = vadd.f32 0.0, %v686
        %v688 = vpop.f32.mrb[0].mxu0
        %689 = vmatprep.mubr.f32.mxu0 0.0
        %690 = vmatmul.mubr.f32.gmra.mrb[0].mxu0 %v389
        %v691 = vpop.f32.mrb[0].mxu0
        %v692 = vadd.f32 0.0, %v691
        %v693 = vpop.f32.mrb[0].mxu0
        %694 = vdwg.mxu0
        %v695 = vadd.f32 %v575, %v677
        %v696 = vadd.f32 %v580, %v682
        %v697 = vadd.f32 %v585, %v687
        %v698 = vadd.f32 %v590, %v692
        %v699 = vld [vmem:[%s2] sm:$0x1]
        %v701 = vlaneseq
        %v702 = vshrl.u32 %v701, 7
        %v703 = vsub.s32 0, %v702
        %v704 = vrot.slane %v699, %v703
        %v706 = vadd.f32 %v695, %v704
        %v707 = vadd.f32 %v696, %v704
        %v708 = vadd.f32 %v697, %v704
        %v709 = vadd.f32 %v698, %v704
        %v710 = vmax.f32 %v706, 0.0
        %v711 = vmax.f32 %v707, 0.0
        %v712 = vmax.f32 %v708, 0.0
        %v713 = vmax.f32 %v709, 0.0
        %v714 = vrot.slane %v710, 7
        %v715 = vrot.slane %v711, 7
        %v716 = vrot.slane %v712, 7
        %v717 = vrot.slane %v713, 7
        %v718 = vsel %vm328, %v716, %v717
        %v719 = vsel %vm328, %v715, %v716
        %v720 = vsel %vm328, %v714, %v715
        %v721 = vsel %vm328, %v717, %v714
        %v722 = vmul.f32 %v721, %v336
        %v723 = vmul.f32 %v720, %v341
        %v724 = vmul.f32 %v719, %v346
        %v725 = vmul.f32 %v718, %v351
        %v726 = vrot.slane %v710, 1
        %v727 = vrot.slane %v711, 1
        %v728 = vrot.slane %v712, 1
        %v729 = vrot.slane %v713, 1
        %v730 = vsel %vm361, %v728, %v729
        %v731 = vsel %vm361, %v727, %v728
        %v732 = vsel %vm361, %v726, %v727
        %v733 = vsel %vm361, %v729, %v726
        %v734 = vmul.f32 %v732, %v369
        %v735 = vmul.f32 %v731, %v374
        %v736 = vmul.f32 %v730, %v379
        %v737 = vmul.f32 %v733, %v384
        %v738 = vld [vmem:[#allocation5] sm:$0xff]
        %v739 = vld [vmem:[#allocation5 + $0x8] sm:$0xff]
        %v740 = vld [vmem:[#allocation5 + $0x10] sm:$0xff]
        %v741 = vld [vmem:[#allocation5 + $0x18] sm:$0xff]
        %v742 = vld [vmem:[#allocation5 + $0x20] sm:$0xff]
        %v743 = vld [vmem:[#allocation5 + $0x28] sm:$0xff]
        %v744 = vld [vmem:[#allocation5 + $0x30] sm:$0xff]
        %v745 = vld [vmem:[#allocation5 + $0x38] sm:$0xff]
        %v746 = vld [vmem:[#allocation5 + $0x40] sm:$0xff]
        %v747 = vld [vmem:[#allocation5 + $0x48] sm:$0xff]
        %v748 = vld [vmem:[#allocation5 + $0x50] sm:$0xff]
        %v749 = vld [vmem:[#allocation5 + $0x58] sm:$0xff]
        %v750 = vld [vmem:[#allocation5 + $0x60] sm:$0xff]
        %v751 = vld [vmem:[#allocation5 + $0x68] sm:$0xff]
        %v752 = vld [vmem:[#allocation5 + $0x70] sm:$0xff]
        %v753 = vld [vmem:[#allocation5 + $0x78] sm:$0xff]
        %s754 = scalar_lea.vmem [#allocation5], 128
        %v755 = vld [vmem:[%s754] sm:$0xff]
        %v756 = vld [vmem:[%s754 + $0x8] sm:$0xff]
        %v757 = vld [vmem:[%s754 + $0x10] sm:$0xff]
        %v758 = vld [vmem:[%s754 + $0x18] sm:$0xff]
        %v759 = vld [vmem:[%s754 + $0x20] sm:$0xff]
        %v760 = vld [vmem:[%s754 + $0x28] sm:$0xff]
        %v761 = vld [vmem:[%s754 + $0x30] sm:$0xff]
        %v762 = vld [vmem:[%s754 + $0x38] sm:$0xff]
        %v763 = vld [vmem:[%s754 + $0x40] sm:$0xff]
        %v764 = vld [vmem:[%s754 + $0x48] sm:$0xff]
        %v765 = vld [vmem:[%s754 + $0x50] sm:$0xff]
        %v766 = vld [vmem:[%s754 + $0x58] sm:$0xff]
        %v767 = vld [vmem:[%s754 + $0x60] sm:$0xff]
        %v768 = vld [vmem:[%s754 + $0x68] sm:$0xff]
        %v769 = vld [vmem:[%s754 + $0x70] sm:$0xff]
        %v770 = vld [vmem:[%s754 + $0x78] sm:$0xff]
        %771 = vmatprep.subr.mxu0 0.0
        %772 = vmatpush1.msra.mxu0 %v755
        %773 = vmatprep.subr.mxu0 0.0
        %774 = vmatpush1.msra.mxu0 %v756
        %775 = vmatprep.subr.mxu0 0.0
        %776 = vmatpush1.msra.mxu0 %v757
        %777 = vmatprep.subr.mxu0 0.0
        %778 = vmatpush1.msra.mxu0 %v758
        %779 = vmatprep.subr.mxu0 0.0
        %780 = vmatpush1.msra.mxu0 %v759
        %781 = vmatprep.subr.mxu0 0.0
        %782 = vmatpush1.msra.mxu0 %v760
        %783 = vmatprep.subr.mxu0 0.0
        %784 = vmatpush1.msra.mxu0 %v761
        %785 = vmatprep.subr.mxu0 0.0
        %786 = vmatpush1.msra.mxu0 %v762
        %787 = vmatprep.subr.mxu0 0.0
        %788 = vmatpush1.msra.mxu0 %v763
        %789 = vmatprep.subr.mxu0 0.0
        %790 = vmatpush1.msra.mxu0 %v764
        %791 = vmatprep.subr.mxu0 0.0
        %792 = vmatpush1.msra.mxu0 %v765
        %793 = vmatprep.subr.mxu0 0.0
        %794 = vmatpush1.msra.mxu0 %v766
        %795 = vmatprep.subr.mxu0 0.0
        %796 = vmatpush1.msra.mxu0 %v767
        %797 = vmatprep.subr.mxu0 0.0
        %798 = vmatpush1.msra.mxu0 %v768
        %799 = vmatprep.subr.mxu0 0.0
        %800 = vmatpush1.msra.mxu0 %v769
        %801 = vmatprep.subr.mxu0 0.0
        %802 = vmatpush1.msra.mxu0 %v770
        %803 = vmatprep.subr.mxu0 0.0
        %804 = vmatpush1.msra.mxu0 0.0
        %805 = vmatprep.subr.mxu0 0.0
        %806 = vmatpush1.msra.mxu0 0.0
        %807 = vmatprep.subr.mxu0 0.0
        %808 = vmatpush1.msra.mxu0 0.0
        %809 = vmatprep.subr.mxu0 0.0
        %810 = vmatpush1.msra.mxu0 0.0
        %811 = vmatprep.subr.mxu0 0.0
        %812 = vmatpush1.msra.mxu0 0.0
        %813 = vmatprep.subr.mxu0 0.0
        %814 = vmatpush1.msra.mxu0 0.0
        %815 = vmatprep.subr.mxu0 0.0
        %816 = vmatpush1.msra.mxu0 0.0
        %817 = vmatprep.subr.mxu0 0.0
        %818 = vmatpush1.msra.mxu0 0.0
        %819 = vmatprep.subr.mxu0 0.0
        %820 = vmatpush1.msra.mxu0 0.0
        %821 = vmatprep.subr.mxu0 0.0
        %822 = vmatpush1.msra.mxu0 0.0
        %823 = vmatprep.subr.mxu0 0.0
        %824 = vmatpush1.msra.mxu0 0.0
        %825 = vmatprep.subr.mxu0 0.0
        %826 = vmatpush1.msra.mxu0 0.0
        %827 = vmatprep.subr.mxu0 0.0
        %828 = vmatpush1.msra.mxu0 0.0
        %829 = vmatprep.subr.mxu0 0.0
        %830 = vmatpush1.msra.mxu0 0.0
        %831 = vmatprep.subr.mxu0 0.0
        %832 = vmatpush1.msra.mxu0 0.0
        %833 = vmatprep.subr.mxu0 0.0
        %834 = vmatpush1.msra.mxu0 0.0
        %835 = vmatprep.mubr.f32.mxu0 0.0
        %836 = vmatmul.mubr.f32.gmra.mrb[0].mxu0 %v710
        %v837 = vpop.f32.mrb[0].mxu0
        %v838 = vadd.f32 0.0, %v837
        %v839 = vpop.f32.mrb[0].mxu0
        %840 = vmatprep.mubr.f32.mxu0 0.0
        %841 = vmatmul.mubr.f32.gmra.mrb[0].mxu0 %v711
        %v842 = vpop.f32.mrb[0].mxu0
        %v843 = vadd.f32 0.0, %v842
        %v844 = vpop.f32.mrb[0].mxu0
        %845 = vmatprep.mubr.f32.mxu0 0.0
        %846 = vmatmul.mubr.f32.gmra.mrb[0].mxu0 %v712
        %v847 = vpop.f32.mrb[0].mxu0
        %v848 = vadd.f32 0.0, %v847
        %v849 = vpop.f32.mrb[0].mxu0
        %850 = vmatprep.mubr.f32.mxu0 0.0
        %851 = vmatmul.mubr.f32.gmra.mrb[0].mxu0 %v713
        %v852 = vpop.f32.mrb[0].mxu0
        %v853 = vadd.f32 0.0, %v852
        %v854 = vpop.f32.mrb[0].mxu0
        %855 = vdwg.mxu0
        %856 = vmatprep.subr.mxu0 0.0
        %857 = vmatpush1.msra.mxu0 %v738
        %858 = vmatprep.subr.mxu0 0.0
        %859 = vmatpush1.msra.mxu0 %v739
        %860 = vmatprep.subr.mxu0 0.0
        %861 = vmatpush1.msra.mxu0 %v740
        %862 = vmatprep.subr.mxu0 0.0
        %863 = vmatpush1.msra.mxu0 %v741
        %864 = vmatprep.subr.mxu0 0.0
        %865 = vmatpush1.msra.mxu0 %v742
        %866 = vmatprep.subr.mxu0 0.0
        %867 = vmatpush1.msra.mxu0 %v743
        %868 = vmatprep.subr.mxu0 0.0
        %869 = vmatpush1.msra.mxu0 %v744
        %870 = vmatprep.subr.mxu0 0.0
        %871 = vmatpush1.msra.mxu0 %v745
        %872 = vmatprep.subr.mxu0 0.0
        %873 = vmatpush1.msra.mxu0 %v746
        %874 = vmatprep.subr.mxu0 0.0
        %875 = vmatpush1.msra.mxu0 %v747
        %876 = vmatprep.subr.mxu0 0.0
        %877 = vmatpush1.msra.mxu0 %v748
        %878 = vmatprep.subr.mxu0 0.0
        %879 = vmatpush1.msra.mxu0 %v749
        %880 = vmatprep.subr.mxu0 0.0
        %881 = vmatpush1.msra.mxu0 %v750
        %882 = vmatprep.subr.mxu0 0.0
        %883 = vmatpush1.msra.mxu0 %v751
        %884 = vmatprep.subr.mxu0 0.0
        %885 = vmatpush1.msra.mxu0 %v752
        %886 = vmatprep.subr.mxu0 0.0
        %887 = vmatpush1.msra.mxu0 %v753
        %888 = vmatprep.subr.mxu0 0.0
        %889 = vmatpush1.msra.mxu0 0.0
        %890 = vmatprep.subr.mxu0 0.0
        %891 = vmatpush1.msra.mxu0 0.0
        %892 = vmatprep.subr.mxu0 0.0
        %893 = vmatpush1.msra.mxu0 0.0
        %894 = vmatprep.subr.mxu0 0.0
        %895 = vmatpush1.msra.mxu0 0.0
        %896 = vmatprep.subr.mxu0 0.0
        %897 = vmatpush1.msra.mxu0 0.0
        %898 = vmatprep.subr.mxu0 0.0
        %899 = vmatpush1.msra.mxu0 0.0
        %900 = vmatprep.subr.mxu0 0.0
        %901 = vmatpush1.msra.mxu0 0.0
        %902 = vmatprep.subr.mxu0 0.0
        %903 = vmatpush1.msra.mxu0 0.0
        %904 = vmatprep.subr.mxu0 0.0
        %905 = vmatpush1.msra.mxu0 0.0
        %906 = vmatprep.subr.mxu0 0.0
        %907 = vmatpush1.msra.mxu0 0.0
        %908 = vmatprep.subr.mxu0 0.0
        %909 = vmatpush1.msra.mxu0 0.0
        %910 = vmatprep.subr.mxu0 0.0
        %911 = vmatpush1.msra.mxu0 0.0
        %912 = vmatprep.subr.mxu0 0.0
        %913 = vmatpush1.msra.mxu0 0.0
        %914 = vmatprep.subr.mxu0 0.0
        %915 = vmatpush1.msra.mxu0 0.0
        %916 = vmatprep.subr.mxu0 0.0
        %917 = vmatpush1.msra.mxu0 0.0
        %918 = vmatprep.subr.mxu0 0.0
        %919 = vmatpush1.msra.mxu0 0.0
        %920 = vmatprep.mubr.f32.mxu0 0.0
        %921 = vmatmul.mubr.f32.gmra.mrb[0].mxu0 %v722
        %v922 = vpop.f32.mrb[0].mxu0
        %v923 = vadd.f32 %v838, %v922
        %v924 = vpop.f32.mrb[0].mxu0
        %925 = vmatprep.mubr.f32.mxu0 0.0
        %926 = vmatmul.mubr.f32.gmra.mrb[0].mxu0 %v723
        %v927 = vpop.f32.mrb[0].mxu0
        %v928 = vadd.f32 %v843, %v927
        %v929 = vpop.f32.mrb[0].mxu0
        %930 = vmatprep.mubr.f32.mxu0 0.0
        %931 = vmatmul.mubr.f32.gmra.mrb[0].mxu0 %v724
        %v932 = vpop.f32.mrb[0].mxu0
        %v933 = vadd.f32 %v848, %v932
        %v934 = vpop.f32.mrb[0].mxu0
        %935 = vmatprep.mubr.f32.mxu0 0.0
        %936 = vmatmul.mubr.f32.gmra.mrb[0].mxu0 %v725
        %v937 = vpop.f32.mrb[0].mxu0
        %v938 = vadd.f32 %v853, %v937
        %v939 = vpop.f32.mrb[0].mxu0
        %940 = vdwg.mxu0
        %s941 = scalar_lea.vmem [#allocation5], 256
        %v942 = vld [vmem:[%s941] sm:$0xff]
        %v943 = vld [vmem:[%s941 + $0x8] sm:$0xff]
        %v944 = vld [vmem:[%s941 + $0x10] sm:$0xff]
        %v945 = vld [vmem:[%s941 + $0x18] sm:$0xff]
        %v946 = vld [vmem:[%s941 + $0x20] sm:$0xff]
        %v947 = vld [vmem:[%s941 + $0x28] sm:$0xff]
        %v948 = vld [vmem:[%s941 + $0x30] sm:$0xff]
        %v949 = vld [vmem:[%s941 + $0x38] sm:$0xff]
        %v950 = vld [vmem:[%s941 + $0x40] sm:$0xff]
        %v951 = vld [vmem:[%s941 + $0x48] sm:$0xff]
        %v952 = vld [vmem:[%s941 + $0x50] sm:$0xff]
        %v953 = vld [vmem:[%s941 + $0x58] sm:$0xff]
        %v954 = vld [vmem:[%s941 + $0x60] sm:$0xff]
        %v955 = vld [vmem:[%s941 + $0x68] sm:$0xff]
        %v956 = vld [vmem:[%s941 + $0x70] sm:$0xff]
        %v957 = vld [vmem:[%s941 + $0x78] sm:$0xff]
        %958 = vmatprep.subr.mxu0 0.0
        %959 = vmatpush1.msra.mxu0 %v942
        %960 = vmatprep.subr.mxu0 0.0
        %961 = vmatpush1.msra.mxu0 %v943
        %962 = vmatprep.subr.mxu0 0.0
        %963 = vmatpush1.msra.mxu0 %v944
        %964 = vmatprep.subr.mxu0 0.0
        %965 = vmatpush1.msra.mxu0 %v945
        %966 = vmatprep.subr.mxu0 0.0
        %967 = vmatpush1.msra.mxu0 %v946
        %968 = vmatprep.subr.mxu0 0.0
        %969 = vmatpush1.msra.mxu0 %v947
        %970 = vmatprep.subr.mxu0 0.0
        %971 = vmatpush1.msra.mxu0 %v948
        %972 = vmatprep.subr.mxu0 0.0
        %973 = vmatpush1.msra.mxu0 %v949
        %974 = vmatprep.subr.mxu0 0.0
        %975 = vmatpush1.msra.mxu0 %v950
        %976 = vmatprep.subr.mxu0 0.0
        %977 = vmatpush1.msra.mxu0 %v951
        %978 = vmatprep.subr.mxu0 0.0
        %979 = vmatpush1.msra.mxu0 %v952
        %980 = vmatprep.subr.mxu0 0.0
        %981 = vmatpush1.msra.mxu0 %v953
        %982 = vmatprep.subr.mxu0 0.0
        %983 = vmatpush1.msra.mxu0 %v954
        %984 = vmatprep.subr.mxu0 0.0
        %985 = vmatpush1.msra.mxu0 %v955
        %986 = vmatprep.subr.mxu0 0.0
        %987 = vmatpush1.msra.mxu0 %v956
        %988 = vmatprep.subr.mxu0 0.0
        %989 = vmatpush1.msra.mxu0 %v957
        %990 = vmatprep.subr.mxu0 0.0
        %991 = vmatpush1.msra.mxu0 0.0
        %992 = vmatprep.subr.mxu0 0.0
        %993 = vmatpush1.msra.mxu0 0.0
        %994 = vmatprep.subr.mxu0 0.0
        %995 = vmatpush1.msra.mxu0 0.0
        %996 = vmatprep.subr.mxu0 0.0
        %997 = vmatpush1.msra.mxu0 0.0
        %998 = vmatprep.subr.mxu0 0.0
        %999 = vmatpush1.msra.mxu0 0.0
        %1000 = vmatprep.subr.mxu0 0.0
        %1001 = vmatpush1.msra.mxu0 0.0
        %1002 = vmatprep.subr.mxu0 0.0
        %1003 = vmatpush1.msra.mxu0 0.0
        %1004 = vmatprep.subr.mxu0 0.0
        %1005 = vmatpush1.msra.mxu0 0.0
        %1006 = vmatprep.subr.mxu0 0.0
        %1007 = vmatpush1.msra.mxu0 0.0
        %1008 = vmatprep.subr.mxu0 0.0
        %1009 = vmatpush1.msra.mxu0 0.0
        %1010 = vmatprep.subr.mxu0 0.0
        %1011 = vmatpush1.msra.mxu0 0.0
        %1012 = vmatprep.subr.mxu0 0.0
        %1013 = vmatpush1.msra.mxu0 0.0
        %1014 = vmatprep.subr.mxu0 0.0
        %1015 = vmatpush1.msra.mxu0 0.0
        %1016 = vmatprep.subr.mxu0 0.0
        %1017 = vmatpush1.msra.mxu0 0.0
        %1018 = vmatprep.subr.mxu0 0.0
        %1019 = vmatpush1.msra.mxu0 0.0
        %1020 = vmatprep.subr.mxu0 0.0
        %1021 = vmatpush1.msra.mxu0 0.0
        %1022 = vmatprep.mubr.f32.mxu0 0.0
        %1023 = vmatmul.mubr.f32.gmra.mrb[0].mxu0 %v734
        %v1024 = vpop.f32.mrb[0].mxu0
        %v1025 = vadd.f32 0.0, %v1024
        %v1026 = vpop.f32.mrb[0].mxu0
        %1027 = vmatprep.mubr.f32.mxu0 0.0
        %1028 = vmatmul.mubr.f32.gmra.mrb[0].mxu0 %v735
        %v1029 = vpop.f32.mrb[0].mxu0
        %v1030 = vadd.f32 0.0, %v1029
        %v1031 = vpop.f32.mrb[0].mxu0
        %1032 = vmatprep.mubr.f32.mxu0 0.0
        %1033 = vmatmul.mubr.f32.gmra.mrb[0].mxu0 %v736
        %v1034 = vpop.f32.mrb[0].mxu0
        %v1035 = vadd.f32 0.0, %v1034
        %v1036 = vpop.f32.mrb[0].mxu0
        %1037 = vmatprep.mubr.f32.mxu0 0.0
        %1038 = vmatmul.mubr.f32.gmra.mrb[0].mxu0 %v737
        %v1039 = vpop.f32.mrb[0].mxu0
        %v1040 = vadd.f32 0.0, %v1039
        %v1041 = vpop.f32.mrb[0].mxu0
        %1042 = vdwg.mxu0
        %v1043 = vadd.f32 %v923, %v1025
        %v1044 = vadd.f32 %v928, %v1030
        %v1045 = vadd.f32 %v933, %v1035
        %v1046 = vadd.f32 %v938, %v1040
        %v1047 = vld [vmem:[%s4] sm:$0x1]
        %v1049 = vlaneseq
        %v1050 = vshrl.u32 %v1049, 7
        %v1051 = vsub.s32 0, %v1050
        %v1052 = vrot.slane %v1047, %v1051
        %v1054 = vadd.f32 %v1043, %v1052
        %v1055 = vadd.f32 %v1044, %v1052
        %v1056 = vadd.f32 %v1045, %v1052
        %v1057 = vadd.f32 %v1046, %v1052
        %v1058 = vadd.f32 %v1054, %v310
        %v1059 = vadd.f32 %v1055, %v311
        %v1060 = vadd.f32 %v1056, %v312
        %v1061 = vadd.f32 %v1057, %v313
        %1062 = vst [vmem:[%s302] sm:$0xff] %v1058
        %1063 = vst [vmem:[%s302 + $0x8] sm:$0xff] %v1059
        %1064 = vst [vmem:[%s302 + $0x10] sm:$0xff] %v1060
        %1065 = vst [vmem:[%s302 + $0x18] sm:$0xff] %v1061
        %s1066 = sand.u32 %s183, 1
        %s1067 = scalar_lea.sflag [#allocation4], %s1066
        %s1068 = sand.u32 %s183, 1
        %s1069 = smul.addr %s1068, 32
        %s1070 = scalar_lea.vmem [#allocation7], %s1069
        // Predicated region
        $region57: #{tpu_custom_call.1} parent=47 // pred_check
          %p1071 = pneg %p193
        $region58: #{tpu_custom_call.1} parent=47 // pred_check_branch
          %1073 = sbr.rel (%p1071) target = $region60
        $region59: #{tpu_custom_call.1} parent=47 // pred_region
          %s1074 = smul.u32 4, %s23
          %s1076 = ssub.s32 512, 512
          %1077 = vsyncadd %s1067, %s1076
          %s1078 = smul.addr %s1074, 128
          %s1079 = scalar_lea.hbm %s7, %s1078
          %s1080 = sshll.u32 %s1070, 4
          %s1081 = int_to_ptr.vmem [resolvable:$true] %s1080
          %1086 = dma.vmem_to_hbm [thread:$0]  %s1081, 512, %s1079, %s1067, 128, 128, 8
        $region60: #{tpu_custom_call.1} parent=47 // pred_fallthru
          _
      $region48: #{tpu_custom_call.1} parent=5 // pred_fallthru
        _
      %p1087 = scmp.le.s32.totalorder 2, %s18
      // Predicated region
      $region61: #{tpu_custom_call.1} parent=5 // pred_check
        %p1088 = pneg %p1087
      $region62: #{tpu_custom_call.1} parent=5 // pred_check_branch
        %1090 = sbr.rel (%p1088) target = $region64
      $region63: #{tpu_custom_call.1} parent=5 // pred_region
        %s1091 = ssub.s32 %s18, 2
        // Predicated region
        $region65: #{tpu_custom_call.1} parent=63 // pred_check
          %p1092 = pneg %p199
        $region66: #{tpu_custom_call.1} parent=63 // pred_check_branch
          %1094 = sbr.rel (%p1092) target = $region68
        $region67: #{tpu_custom_call.1} parent=63 // pred_region
          %s1095 = sand.u32 %s184, 1
          %s1096 = scalar_lea.sflag [#allocation4], %s1095
          %s1097 = sand.u32 %s184, 1
          %s1098 = smul.addr %s1097, 32
          %s1099 = scalar_lea.vmem [#allocation7], %s1098
          %1100 = dma.done %s1096, 512
        $region68: #{tpu_custom_call.1} parent=63 // pred_fallthru
          _
      $region64: #{tpu_custom_call.1} parent=5 // pred_fallthru
        _
    $region6: #{tpu_custom_call.1} parent=1 // loop_footer
      %s22 = sadd.s32 1, %s18
    $region7: #{tpu_custom_call.1} parent=1 // loop_footer_branch
      %17 = sbr.rel target = $region3
    $region8: #{tpu_custom_call.1} parent=1 // loop_exit
      _
    %1101 = vsyncpa [#allocation3], 1
    %s1102 = scalar_lea.sflag [#allocation3], 1
    %1103 = vsyncpa %s1102, 1
    %1104 = vsyncpa [#allocation6], 1
    %1105 = vsyncpa [#allocation4], 1
    %s1106 = scalar_lea.sflag [#allocation4], 1
    %1107 = vsyncpa %s1106, 1

</llo_original>
